<compile_context>
chip_gen: v6e
topology: v6e:2x2x1
jax: 0.10.0
libtpu: 0.0.40
codegen_flags: <defaults>
</compile_context>

<pallas_src>
import functools

import jax
import jax.numpy as jnp
from jax.experimental import pallas as pl
from jax.experimental.pallas import tpu as pltpu


def _round_up(n, m):
    return ((n + m - 1) // m) * m


def _l2_distance_kernel(x_ref, x0_ref, out_ref, acc_ref, *, epsilon):
    """One (TB, TD) tile; accumulates sum((x - x0)^2) over the feature axis.

    grid = (batch_tiles, feature_tiles). The feature axis is the reduction
    axis (last, "arbitrary"); the batch axis is "parallel".
    """
    j = pl.program_id(1)

    @pl.when(j == 0)
    def _():
        acc_ref[...] = jnp.zeros_like(acc_ref)

    d = x_ref[...] - x0_ref[...]                              # VPU, (TB, TD)
    acc_ref[...] += jnp.sum(d * d, axis=1, keepdims=True)     # XLU row-reduce

    @pl.when(j == pl.num_programs(1) - 1)
    def _():
        out_ref[...] = jnp.sqrt(acc_ref[...]) - epsilon


def constraint_distance(x, x0, epsilon, subset=None, *, block_b=256, block_d=512):
    """Pallas implementation of ConstraintDistance.forward (L2 distance).

    x, x0: arrays whose leading dim is the batch; all non-batch dims are
    flattened into the feature axis. epsilon: Python float.
    Returns g(x) = ||x - x0||_2 - epsilon, shape [B] float32.
    """
    # TODO(synk): an arbitrary user-supplied `distance` callable cannot be
    # lowered generically; this kernel implements Euclidean (L2) distance.
    if subset is not None:
        x0 = x0[subset]                       # plain-JAX gather glue
    if x.shape[0] != x0.shape[0]:
        raise ValueError('x and subset of x0 have different batch size.')

    B = x.shape[0]
    xf = jnp.asarray(x, jnp.float32).reshape(B, -1)
    x0f = jnp.asarray(x0, jnp.float32).reshape(B, -1)
    D = xf.shape[1]

    # Tile sizes on the (sublane=8, lane=128) grain.
    TB = min(block_b, _round_up(B, 8))
    TD = min(block_d, _round_up(D, 128))
    Bp = _round_up(B, TB)
    Dp = _round_up(D, TD)
    if (Bp, Dp) != (B, D):
        xf = jnp.pad(xf, ((0, Bp - B), (0, Dp - D)))
        x0f = jnp.pad(x0f, ((0, Bp - B), (0, Dp - D)))

    grid = (Bp // TB, Dp // TD)

    out = pl.pallas_call(
        functools.partial(_l2_distance_kernel, epsilon=float(epsilon)),
        out_shape=jax.ShapeDtypeStruct((Bp, 1), jnp.float32),
        grid=grid,
        in_specs=[
            pl.BlockSpec((TB, TD), lambda i, j: (i, j)),   # x tile
            pl.BlockSpec((TB, TD), lambda i, j: (i, j)),   # x0 tile
        ],
        # Same output block across the feature axis -> accumulator-resident
        # output; only written on the last reduction step.
        out_specs=pl.BlockSpec((TB, 1), lambda i, j: (i, 0)),
        scratch_shapes=[pltpu.VMEM((TB, 1), jnp.float32)],
        compiler_params=pltpu.CompilerParams(
            dimension_semantics=("parallel", "arbitrary"),
            # Headroom below v7x's 64 MiB physical VMEM; the pipeline needs
            # ~ 2 inputs * 2 buffers * TB*TD*4 B (~2 MiB at these defaults).
            vmem_limit_bytes=48 * 1024 * 1024,
        ),
    )(xf, x0f)
    return out[:B, 0]


if __name__ == "__main__":
    key = jax.random.PRNGKey(0)
    kx, k0 = jax.random.split(key)
    shape = (2, 4, 16, 16)        # batch=2, channels=4, spatial=16x16 -> D=1024
    epsilon = 0.5

    x = jax.random.normal(kx, shape, dtype=jnp.float32)
    x0 = jax.random.normal(k0, shape, dtype=jnp.float32)

    g = jax.block_until_ready(constraint_distance(x, x0, epsilon))
    ref = jnp.sqrt(jnp.sum((x - x0) ** 2, axis=(1, 2, 3))) - epsilon
    assert g.shape == (shape[0],)
    assert jnp.allclose(g, ref, atol=1e-3, rtol=1e-4), (g, ref)

    # subset path (plain-JAX gather glue around the same kernel)
    x0_bank = jax.random.normal(jax.random.PRNGKey(1), (6,) + shape[1:], jnp.float32)
    subset = jnp.array([4, 1], dtype=jnp.int32)
    g_sub = jax.block_until_ready(
        constraint_distance(x, x0_bank, epsilon, subset=subset))
    ref_sub = jnp.sqrt(jnp.sum((x - x0_bank[subset]) ** 2, axis=(1, 2, 3))) - epsilon
    assert jnp.allclose(g_sub, ref_sub, atol=1e-3, rtol=1e-4), (g_sub, ref_sub)

    print("KERNEL_OK")
</pallas_src>

<mosaic_0001>
module attributes {stable_mosaic.version = 11 : i64} {
  func.func @_l2_distance_kernel(%arg0: i32, %arg1: i32, %arg2: memref<8x512xf32, #tpu.memory_space<vmem>>, %arg3: memref<8x512xf32, #tpu.memory_space<vmem>>, %arg4: memref<8x1xf32, #tpu.memory_space<vmem>>, %arg5: memref<8x1xf32, #tpu.memory_space<vmem>>) attributes {dimension_semantics = [#tpu.dimension_semantics<parallel>, #tpu.dimension_semantics<arbitrary>], iteration_bounds = array<i64: 1, 2>, scalar_prefetch = 0 : i64, scratch_operands = 1 : i64, tpu.core_type = #tpu.core_type<tc>, window_params = [{transform_indices = @transform_0, window_bounds = array<i64: 8, 512>}, {transform_indices = @transform_1, window_bounds = array<i64: 8, 512>}, {transform_indices = @transform_2, window_bounds = array<i64: 8, 1>}]} {
    %c0_i32 = arith.constant 0 : i32
    %0 = arith.cmpi eq, %arg1, %c0_i32 : i32
    %1 = arith.extui %0 : i1 to i32
    %c0_i32_0 = arith.constant 0 : i32
    %2 = arith.cmpi ne, %1, %c0_i32_0 : i32
    scf.if %2 {
      %cst_9 = arith.constant 0.000000e+00 : f32
      %15 = vector.broadcast %cst_9 : f32 to vector<8x1xf32>
      %c0_10 = arith.constant 0 : index
      %c0_11 = arith.constant 0 : index
      %16 = vector.load %arg5[%c0_10, %c0_11] : memref<8x1xf32, #tpu.memory_space<vmem>>, vector<8x1xf32>
      tpu.vector_store %arg5[%c0_10, %c0_11], %15 {strides = array<i32>} : memref<8x1xf32, #tpu.memory_space<vmem>>, vector<8x1xf32>,
    } else {
    }
    %c0 = arith.constant 0 : index
    %c0_1 = arith.constant 0 : index
    %3 = vector.load %arg2[%c0, %c0_1] : memref<8x512xf32, #tpu.memory_space<vmem>>, vector<8x512xf32>
    %c0_2 = arith.constant 0 : index
    %c0_3 = arith.constant 0 : index
    %4 = vector.load %arg3[%c0_2, %c0_3] : memref<8x512xf32, #tpu.memory_space<vmem>>, vector<8x512xf32>
    %5 = arith.subf %3, %4 : vector<8x512xf32>
    %c0_4 = arith.constant 0 : index
    %c0_5 = arith.constant 0 : index
    %6 = vector.load %arg5[%c0_4, %c0_5] : memref<8x1xf32, #tpu.memory_space<vmem>>, vector<8x1xf32>
    %7 = arith.mulf %5, %5 : vector<8x512xf32>
    %cst = arith.constant dense<0.000000e+00> : vector<8xf32>
    %8 = vector.multi_reduction <add>, %7, %cst [1] : vector<8x512xf32> to vector<8xf32>
    %9 = vector.shape_cast %8 : vector<8xf32> to vector<8x1xf32>
    %10 = arith.addf %6, %9 : vector<8x1xf32>
    %c0_6 = arith.constant 0 : index
    %c0_7 = arith.constant 0 : index
    %11 = vector.load %arg5[%c0_6, %c0_7] : memref<8x1xf32, #tpu.memory_space<vmem>>, vector<8x1xf32>
    tpu.vector_store %arg5[%c0_6, %c0_7], %10 {strides = array<i32>} : memref<8x1xf32, #tpu.memory_space<vmem>>, vector<8x1xf32>,
    %c1_i32 = arith.constant 1 : i32
    %12 = arith.cmpi eq, %arg1, %c1_i32 : i32
    %13 = arith.extui %12 : i1 to i32
    %c0_i32_8 = arith.constant 0 : i32
    %14 = arith.cmpi ne, %13, %c0_i32_8 : i32
    scf.if %14 {
      %c0_9 = arith.constant 0 : index
      %c0_10 = arith.constant 0 : index
      %15 = vector.load %arg5[%c0_9, %c0_10] : memref<8x1xf32, #tpu.memory_space<vmem>>, vector<8x1xf32>
      %16 = math.sqrt %15 : vector<8x1xf32>
      %cst_11 = arith.constant 5.000000e-01 : f32
      %17 = vector.broadcast %cst_11 : f32 to vector<8x1xf32>
      %18 = arith.subf %16, %17 : vector<8x1xf32>
      %c0_12 = arith.constant 0 : index
      %c0_13 = arith.constant 0 : index
      %19 = vector.load %arg4[%c0_12, %c0_13] : memref<8x1xf32, #tpu.memory_space<vmem>>, vector<8x1xf32>
      tpu.vector_store %arg4[%c0_12, %c0_13], %18 {strides = array<i32>} : memref<8x1xf32, #tpu.memory_space<vmem>>, vector<8x1xf32>,
    } else {
    }
    return
  }
  func.func @transform_0(%arg0: i32, %arg1: i32) -> (i32, i32) {
    %c0_i32 = arith.constant 0 : i32
    return %arg0, %arg1 : i32, i32
  }
  func.func @transform_1(%arg0: i32, %arg1: i32) -> (i32, i32) {
    %c0_i32 = arith.constant 0 : i32
    return %arg0, %arg1 : i32, i32
  }
  func.func @transform_2(%arg0: i32, %arg1: i32) -> (i32, i32) {
    %c0_i32 = arith.constant 0 : i32
    %c0_i32_0 = arith.constant 0 : i32
    return %arg0, %c0_i32 : i32, i32
  }
}

</mosaic_0001>

<llo_original>
// kernel: tpu_custom_call.1
$region0: #{tpu_custom_call.1}
  #allocation0 [shape = 'u32[]', space=smem, size = 0x4, offset = 0x4, fixed_abs, tag = 'smem constant byte address 0x4 - core index']
  #allocation1 [shape = 'u32[144,128]{1,0:T(1,128)}', space=vmem, size = 0x12000, scoped, tag = 'internal scratch']
  #allocation2 [shape = 'f32[8,1]{1,0:T(8,128)}', space=vmem, size = 0x1000, scoped, tag = 'scratch operand']
  %s0 = inlined_call_operand.hbm [shape: f32[8,1024], index: 0, kind: input, shape index: {}]
  %s1 = inlined_call_operand.hbm [shape: f32[8,1024], index: 1, kind: input, shape index: {}]
  %s2 = inlined_call_operand.vmem [shape: f32[8,1], index: 2, kind: output, shape index: {}]
  %s3 = sld [smem:[#allocation0]]
  $region57: #{tpu_custom_call.1} parent=0
    _
  %s5 = ssub.s32 1, %s3
  %s6 = scalar_select 0, %s5, %s3
  $region1: #{tpu_custom_call.1} parent=0
    #allocation3 [shape = 'u8[32768]{0}', space=vmem, size = 0x8000, scoped, tag = 'input window, operand 0']
    #allocation4 [shape = 's32[2]{0}', space=sflag, size = 0x8, scoped, tag = 'scoped memory for tpu_custom_call.1']
    #allocation5 [shape = 'u8[32768]{0}', space=vmem, size = 0x8000, scoped, tag = 'input window, operand 1']
    #allocation6 [shape = 's32[2]{0}', space=sflag, size = 0x8, scoped, tag = 'scoped memory for tpu_custom_call.1']
    %7 = vsyncpa [#allocation4], 0
    %s8 = scalar_lea.sflag [#allocation4], 1
    %9 = vsyncpa %s8, 0
    %10 = vsyncpa [#allocation6], 0
    %s11 = scalar_lea.sflag [#allocation6], 1
    %12 = vsyncpa %s11, 0
    loop: start=0, step=1, limit=4
    $region2: #{tpu_custom_call.1} parent=1 // loop_pre_header
      _
    $region3: #{tpu_custom_call.1} parent=1 // loop_header
      %s14 = sphi 0, %s18
      %p15 = scmp.ge.s32.totalorder %s14, 4
      %s21 = sphi 0, %s33
      %s22 = sphi 0, %s29
      %s23 = sphi 0, %s21
      %s24 = sphi 0, %s22
      %s25 = sphi 0, %s23
      %s26 = sphi 0, %s24
      %s38 = sphi 0, %s40
      %s41 = sphi 0, %s38
      %s42 = sphi 0, %s41
      %s58 = sphi 0, %s42
      %s66 = sphi 0, %s68
      %s69 = sphi 0, %s66
      %s70 = sphi 0, %s69
      %s86 = sphi 0, %s70
      %s92 = sphi 0, %s94
      %s95 = sphi 0, %s92
      %s96 = sphi 0, %s95
      %s112 = sphi 0, %s96
    $region4: #{tpu_custom_call.1} parent=1 // loop_header_branch
      %17 = sbr.rel (%p15) target = $region8
    $region5: #{tpu_custom_call.1} parent=1 // loop_body
      %s19 = ssub.s32 %s14, 1
      %s20 = ssub.s32 %s14, 2
      %s27 = sadd.s32 1, %s22
      %p28 = scmp.ge.s32.totalorder %s27, 2
      %s29 = scalar_select %p28, 0, %s27
      %s30 = sadd.s32 1, %s21
      %s31 = scalar_select %p28, %s30, %s21
      %p32 = scmp.ge.s32.totalorder %s31, 1
      %s33 = scalar_select %p32, 0, %s31
      %s34 = ssub.s32 %s21, %s33
      %s35 = ssub.s32 %s22, %s29
      %s36 = sor.u32 %s34, %s35
      %p37 = scmp.eq.s32.totalorder %s36, 0
      %s39 = sadd.s32 %s38, 1
      %s40 = scalar_select %p37, %s38, %s39
      %p43 = pneg %p37
      %p44 = scmp.eq.s32.totalorder %s14, 1
      %p45 = por %p43, %p44
      %p46 = scmp.ne.s32.totalorder %s38, %s41
      %p47 = scmp.eq.s32.totalorder %s14, 0
      %p48 = por %p46, %p47
      %p49 = scmp.ne.s32.totalorder %s38, %s41
      %p50 = scmp.eq.s32.totalorder %s19, 1
      %p51 = por %p49, %p50
      %p52 = scmp.ne.s32.totalorder %s41, %s42
      %p53 = scmp.eq.s32.totalorder %s19, 0
      %p54 = por %p52, %p53
      %p55 = scmp.ne.s32.totalorder %s41, %s42
      %p56 = scmp.eq.s32.totalorder %s20, 1
      %p57 = por %p55, %p56
      %p59 = scmp.ne.s32.totalorder %s42, %s58
      %p60 = scmp.eq.s32.totalorder %s20, 0
      %p61 = por %p59, %p60
      %s62 = ssub.s32 %s21, %s33
      %s63 = ssub.s32 %s22, %s29
      %s64 = sor.u32 %s62, %s63
      %p65 = scmp.eq.s32.totalorder %s64, 0
      %s67 = sadd.s32 %s66, 1
      %s68 = scalar_select %p65, %s66, %s67
      %p71 = pneg %p65
      %p72 = scmp.eq.s32.totalorder %s14, 1
      %p73 = por %p71, %p72
      %p74 = scmp.ne.s32.totalorder %s66, %s69
      %p75 = scmp.eq.s32.totalorder %s14, 0
      %p76 = por %p74, %p75
      %p77 = scmp.ne.s32.totalorder %s66, %s69
      %p78 = scmp.eq.s32.totalorder %s19, 1
      %p79 = por %p77, %p78
      %p80 = scmp.ne.s32.totalorder %s69, %s70
      %p81 = scmp.eq.s32.totalorder %s19, 0
      %p82 = por %p80, %p81
      %p83 = scmp.ne.s32.totalorder %s69, %s70
      %p84 = scmp.eq.s32.totalorder %s20, 1
      %p85 = por %p83, %p84
      %p87 = scmp.ne.s32.totalorder %s70, %s86
      %p88 = scmp.eq.s32.totalorder %s20, 0
      %p89 = por %p87, %p88
      %s90 = ssub.s32 %s21, %s33
      %p91 = scmp.eq.s32.totalorder %s90, 0
      %s93 = sadd.s32 %s92, 1
      %s94 = scalar_select %p91, %s92, %s93
      %p97 = pneg %p91
      %p98 = scmp.eq.s32.totalorder %s14, 1
      %p99 = por %p97, %p98
      %p100 = scmp.ne.s32.totalorder %s92, %s95
      %p101 = scmp.eq.s32.totalorder %s14, 0
      %p102 = por %p100, %p101
      %p103 = scmp.ne.s32.totalorder %s92, %s95
      %p104 = scmp.eq.s32.totalorder %s19, 1
      %p105 = por %p103, %p104
      %p106 = scmp.ne.s32.totalorder %s95, %s96
      %p107 = scmp.eq.s32.totalorder %s19, 0
      %p108 = por %p106, %p107
      %p109 = scmp.ne.s32.totalorder %s95, %s96
      %p110 = scmp.eq.s32.totalorder %s20, 1
      %p111 = por %p109, %p110
      %p113 = scmp.ne.s32.totalorder %s96, %s112
      %p114 = scmp.eq.s32.totalorder %s20, 0
      %p115 = por %p113, %p114
      %p116 = scmp.le.s32.totalorder 1, %s14
      %p117 = scmp.lt.s32.totalorder %s14, 3
      %p118 = pnand %p116, %p117
      %p119 = pneg %p118
      // Predicated region
      $region9: #{tpu_custom_call.1} parent=5 // pred_check
        _
      $region10: #{tpu_custom_call.1} parent=5 // pred_check_branch
        %121 = sbr.rel (%p118) target = $region12
      $region11: #{tpu_custom_call.1} parent=5 // pred_region
        %s122 = ssub.s32 %s14, 1
      $region12: #{tpu_custom_call.1} parent=5 // pred_fallthru
        _
      %p123 = scmp.lt.s32.totalorder %s14, 2
      // Predicated region
      $region13: #{tpu_custom_call.1} parent=5 // pred_check
        %p124 = pneg %p123
      $region14: #{tpu_custom_call.1} parent=5 // pred_check_branch
        %126 = sbr.rel (%p124) target = $region16
      $region15: #{tpu_custom_call.1} parent=5 // pred_region
        // Predicated region
        $region17: #{tpu_custom_call.1} parent=15 // pred_check
          %p127 = pneg %p48
        $region18: #{tpu_custom_call.1} parent=15 // pred_check_branch
          %129 = sbr.rel (%p127) target = $region20
        $region19: #{tpu_custom_call.1} parent=15 // pred_region
          %s130 = sand.u32 %s38, 1
          %s131 = scalar_lea.sflag [#allocation4], %s130
          %s132 = sand.u32 %s38, 1
          %s133 = smul.addr %s132, 32
          %s134 = scalar_lea.vmem [#allocation3], %s133
          %s135 = smul.u32 4, %s22
          %s137 = ssub.s32 512, 512
          %138 = vsyncadd %s131, %s137
          %s139 = smul.addr %s21, 8
          %s140 = sadd.s32 %s135, %s139
          %s141 = smul.addr %s140, 128
          %s142 = scalar_lea.hbm %s0, %s141
          %s144 = sshll.u32 %s134, 4
          %s145 = int_to_ptr.vmem [resolvable:$true] %s144
          %147 = dma.hbm_to_vmem [thread:$0]  %s142, 512, %s145, %s131
        $region20: #{tpu_custom_call.1} parent=15 // pred_fallthru
          _
        // Predicated region
        $region21: #{tpu_custom_call.1} parent=15 // pred_check
          %p148 = pneg %p76
        $region22: #{tpu_custom_call.1} parent=15 // pred_check_branch
          %150 = sbr.rel (%p148) target = $region24
        $region23: #{tpu_custom_call.1} parent=15 // pred_region
          %s151 = sand.u32 %s66, 1
          %s152 = scalar_lea.sflag [#allocation6], %s151
          %s153 = sand.u32 %s66, 1
          %s154 = smul.addr %s153, 32
          %s155 = scalar_lea.vmem [#allocation5], %s154
          %s156 = smul.u32 4, %s22
          %s158 = ssub.s32 512, 512
          %159 = vsyncadd %s152, %s158
          %s160 = smul.addr %s21, 8
          %s161 = sadd.s32 %s156, %s160
          %s162 = smul.addr %s161, 128
          %s163 = scalar_lea.hbm %s1, %s162
          %s165 = sshll.u32 %s155, 4
          %s166 = int_to_ptr.vmem [resolvable:$true] %s165
          %168 = dma.hbm_to_vmem [thread:$0]  %s163, 512, %s166, %s152
        $region24: #{tpu_custom_call.1} parent=15 // pred_fallthru
          _
      $region16: #{tpu_custom_call.1} parent=5 // pred_fallthru
        _
      %p169 = scmp.le.s32.totalorder 1, %s14
      %p170 = scmp.lt.s32.totalorder %s14, 3
      %p171 = pnand %p169, %p170
      %p172 = pneg %p171
      // Predicated region
      $region25: #{tpu_custom_call.1} parent=5 // pred_check
        _
      $region26: #{tpu_custom_call.1} parent=5 // pred_check_branch
        %174 = sbr.rel (%p171) target = $region28
      $region27: #{tpu_custom_call.1} parent=5 // pred_region
        %s175 = ssub.s32 %s14, 1
        %s176 = sand.u32 %s41, 1
        %s177 = scalar_lea.sflag [#allocation4], %s176
        %s178 = sand.u32 %s41, 1
        %s179 = smul.addr %s178, 32
        %s180 = scalar_lea.vmem [#allocation3], %s179
        // Predicated region
        $region29: #{tpu_custom_call.1} parent=27 // pred_check
          %p181 = pneg %p54
        $region30: #{tpu_custom_call.1} parent=27 // pred_check_branch
          %183 = sbr.rel (%p181) target = $region32
        $region31: #{tpu_custom_call.1} parent=27 // pred_region
          %184 = dma.done %s177, 512
        $region32: #{tpu_custom_call.1} parent=27 // pred_fallthru
          _
        %s185 = sand.u32 %s69, 1
        %s186 = scalar_lea.sflag [#allocation6], %s185
        %s187 = sand.u32 %s69, 1
        %s188 = smul.addr %s187, 32
        %s189 = scalar_lea.vmem [#allocation5], %s188
        // Predicated region
        $region33: #{tpu_custom_call.1} parent=27 // pred_check
          %p190 = pneg %p82
        $region34: #{tpu_custom_call.1} parent=27 // pred_check_branch
          %192 = sbr.rel (%p190) target = $region36
        $region35: #{tpu_custom_call.1} parent=27 // pred_region
          %193 = dma.done %s186, 512
        $region36: #{tpu_custom_call.1} parent=27 // pred_fallthru
          _
        %s194 = sand.u32 %s41, 1
        %s195 = scalar_lea.sflag [#allocation4], %s194
        %s196 = sand.u32 %s41, 1
        %s197 = smul.addr %s196, 32
        %s198 = scalar_lea.vmem [#allocation3], %s197
        %p199 = pneg %p54
        %p200 = pneg %p51
        %s201 = sand.u32 %s69, 1
        %s202 = scalar_lea.sflag [#allocation6], %s201
        %s203 = sand.u32 %s69, 1
        %s204 = smul.addr %s203, 32
        %s205 = scalar_lea.vmem [#allocation5], %s204
        %p206 = pneg %p82
        %p207 = pneg %p79
        %p208 = pneg %p108
        %p209 = pneg %p105
        %p210 = scmp.lt.s32.totalorder %s23, 0
        %s211 = scalar_select %p210, %s23, 0
        %s212 = smul.addr %s211, 8
        %s213 = scalar_lea.vmem %s2, %s212
        %s214 = smul.u32 4, %s24
        %s215 = smul.u32 4, %s24
        %p216 = scmp.lt.s32.totalorder %s23, 0
        %s217 = scalar_select %p216, %s23, 0
        %s218 = smul.addr %s217, 8
        %s219 = scalar_lea.vmem %s2, %s218
        %p220 = scmp.eq.s32.totalorder %s24, 0
        // Predicated region
        $region37: #{tpu_custom_call.1} parent=27 // pred_check
          %p221 = pneg %p220
        $region38: #{tpu_custom_call.1} parent=27 // pred_check_branch
          %223 = sbr.rel (%p221) target = $region40
        $region39: #{tpu_custom_call.1} parent=27 // pred_region
          %vm224 = vcmask 7168
          %225 = vst.msk [vmem:[#allocation2] sm:$0xff] %vm224, 0.0
        $region40: #{tpu_custom_call.1} parent=27 // pred_fallthru
          _
        %v226 = vld [vmem:[%s180] sm:$0xff]
        %v227 = vld [vmem:[%s180 + $0x8] sm:$0xff]
        %v228 = vld [vmem:[%s180 + $0x10] sm:$0xff]
        %v229 = vld [vmem:[%s180 + $0x18] sm:$0xff]
        %v230 = vld [vmem:[%s189] sm:$0xff]
        %v231 = vld [vmem:[%s189 + $0x8] sm:$0xff]
        %v232 = vld [vmem:[%s189 + $0x10] sm:$0xff]
        %v233 = vld [vmem:[%s189 + $0x18] sm:$0xff]
        %v234 = vsub.f32 %v226, %v230
        %v235 = vsub.f32 %v227, %v231
        %v236 = vsub.f32 %v228, %v232
        %v237 = vsub.f32 %v229, %v233
        %v238 = vld [vmem:[#allocation2] sm:$0xff]
        %v239 = vmul.f32 %v234, %v234
        %v240 = vmul.f32 %v235, %v235
        %v241 = vmul.f32 %v236, %v236
        %v242 = vmul.f32 %v237, %v237
        %v243 = vadd.f32 %v239, %v240
        %v244 = vadd.f32 %v243, %v241
        %v245 = vadd.f32 %v244, %v242
        %246 = vadd.xlane.f32.xlu0 %v245
        %v247 = vpop.xlane.xlu0 %246
        %v248 = vadd.f32 %v238, %v247
        %vm249 = vcmask 7168
        %250 = vst.msk [vmem:[#allocation2] sm:$0xff] %vm249, %v248
        %p251 = scmp.eq.s32.totalorder %s24, 1
        // Predicated region
        $region41: #{tpu_custom_call.1} parent=27 // pred_check
          %p252 = pneg %p251
        $region42: #{tpu_custom_call.1} parent=27 // pred_check_branch
          %254 = sbr.rel (%p252) target = $region44
        $region43: #{tpu_custom_call.1} parent=27 // pred_region
          %v255 = vld [vmem:[#allocation2] sm:$0xff]
          %v256 = vrsqrt.pop %v255
          %v257 = vmul.f32 %v255, %v256
          %vm258 = vcmp.eq.f32.partialorder %v255, inf
          %v259 = vsel %vm258, %v255, %v257
          %vm260 = vcmp.eq.f32.partialorder %v255, 0.0
          %v261 = vand.u32 %v255, 2147483648
          %v262 = vsel %vm260, %v261, %v259
          %v263 = vsub.f32 %v262, 0.5
          %264 = vst.msk [vmem:[%s219] sm:$0xff] %vm249, %v263
        $region44: #{tpu_custom_call.1} parent=27 // pred_fallthru
          _
        %p265 = scmp.lt.s32.totalorder %s23, 0
        %s266 = scalar_select %p265, %s23, 0
        %s267 = smul.addr %s266, 8
        %s268 = scalar_lea.vmem %s2, %s267
        // Predicated region
        $region45: #{tpu_custom_call.1} parent=27 // pred_check
          %p269 = pneg %p105
        $region46: #{tpu_custom_call.1} parent=27 // pred_check_branch
          %271 = sbr.rel (%p269) target = $region48
        $region47: #{tpu_custom_call.1} parent=27 // pred_region
          _
        $region48: #{tpu_custom_call.1} parent=27 // pred_fallthru
          _
        // Predicated region
        $region49: #{tpu_custom_call.1} parent=27 // pred_check
          %p272 = pneg %p105
        $region50: #{tpu_custom_call.1} parent=27 // pred_check_branch
          %274 = sbr.rel (%p272) target = $region52
        $region51: #{tpu_custom_call.1} parent=27 // pred_region
          %p275 = scmp.lt.s32.totalorder %s23, 0
          %s276 = scalar_select %p275, %s23, 0
          %s277 = smul.addr %s276, 8
          %s278 = scalar_lea.vmem %s2, %s277
        $region52: #{tpu_custom_call.1} parent=27 // pred_fallthru
          _
      $region28: #{tpu_custom_call.1} parent=5 // pred_fallthru
        _
      %p279 = scmp.le.s32.totalorder 2, %s14
      // Predicated region
      $region53: #{tpu_custom_call.1} parent=5 // pred_check
        %p280 = pneg %p279
      $region54: #{tpu_custom_call.1} parent=5 // pred_check_branch
        %282 = sbr.rel (%p280) target = $region56
      $region55: #{tpu_custom_call.1} parent=5 // pred_region
        %s283 = ssub.s32 %s14, 2
      $region56: #{tpu_custom_call.1} parent=5 // pred_fallthru
        _
    $region6: #{tpu_custom_call.1} parent=1 // loop_footer
      %s18 = sadd.s32 1, %s14
    $region7: #{tpu_custom_call.1} parent=1 // loop_footer_branch
      %13 = sbr.rel target = $region3
    $region8: #{tpu_custom_call.1} parent=1 // loop_exit
      _
    %284 = vsyncpa [#allocation4], 1
    %s285 = scalar_lea.sflag [#allocation4], 1
    %286 = vsyncpa %s285, 1
    %287 = vsyncpa [#allocation6], 1
    %s288 = scalar_lea.sflag [#allocation6], 1
    %289 = vsyncpa %s288, 1

</llo_original>
